<compile_context>
chip_gen: v7x
topology: tpu7x:2x2x1
jax: 0.10.0
libtpu: 0.0.40
codegen_flags: <defaults>
</compile_context>

<pallas_src>
import jax
import jax.numpy as jnp
from jax.experimental import pallas as pl
from jax.experimental.pallas import tpu as pltpu


LN_EPS = 1e-5


def _round_up(x, m):
    return ((x + m - 1) // m) * m


def _cdiv(a, b):
    return (a + b - 1) // b


# ------------------------------ fused kernel ------------------------------- #

def _make_decoder_kernel(n_layers, d_model, d_ff, numerical):
    """Fused kernel: n_layers x _ResBlock followed by the readout Linear."""
    two_dm = 2 * d_model

    def kernel(x_ref, w1_ref, w2_ref, vec_ref, rw_ref, rb_ref, o_ref):
        # vec_ref rows per layer: 0 = linear1 bias (2*d_ff),
        #   1 = linear2 bias (2*d_model, zero padded), 2 = LN gamma, 3 = LN beta.
        h = x_ref[...].astype(jnp.float32)
        for l in range(n_layers):
            # ---- linear1 (d_model -> 2*d_ff) + GLU, one MXU matmul ----
            z = jnp.dot(h, w1_ref[l], preferred_element_type=jnp.float32)
            z = z + vec_ref[l, 0:1, :]
            # d_ff % 128 == 0 -> lane-aligned split, free slices.
            g = z[:, :d_ff] * jax.nn.sigmoid(z[:, d_ff:])

            # ---- linear2 (d_ff -> 2*d_model) + GLU, ONE fused matmul ----
            z2 = jnp.dot(g, w2_ref[l], preferred_element_type=jnp.float32)
            z2 = z2 + vec_ref[l, 1:2, :two_dm]
            # GLU split at d_model (=32, not 128-aligned): static lane
            # slice / masked select on a sub-vreg-wide value (XLU slack).
            y = z2[:, :d_model] * jax.nn.sigmoid(z2[:, d_model:]) + h  # residual

            # ---- LayerNorm (biased var, eps=1e-5), single pass ----
            gamma = vec_ref[l, 2:3, :d_model]
            beta = vec_ref[l, 3:4, :d_model]
            mean = jnp.mean(y, axis=-1, keepdims=True)
            msq = jnp.mean(y * y, axis=-1, keepdims=True)
            var = jnp.maximum(msq - mean * mean, 0.0)
            h = (y - mean) * (jax.lax.rsqrt(var + LN_EPS) * gamma) + beta

        # ---- readout (d_model -> readout_dim), only HBM store ----
        out = jnp.dot(h, rw_ref[...], preferred_element_type=jnp.float32)
        out = out + rb_ref[...]
        if numerical:
            out = jax.nn.sigmoid(out) + 1.0
        o_ref[...] = out.astype(o_ref.dtype)

    return kernel


# ------------------------------ param packing ------------------------------- #

def pack_params(params):
    """PyTorch-layout params -> kernel layout (4 stacked weight inputs)."""
    layers = params["layers"]
    d_model = layers[0]["linear1_w"].shape[1]
    d_ff = layers[0]["linear1_w"].shape[0] // 2
    vec_w = 2 * d_ff
    assert d_ff % 128 == 0, "lane-aligned GLU split in linear1 needs d_ff % 128 == 0"
    assert 2 * d_model <= vec_w

    w1_stack = jnp.stack([p["linear1_w"].T for p in layers])   # (L, d_model, 2*d_ff)
    w2_stack = jnp.stack([p["linear2_w"].T for p in layers])   # (L, d_ff, 2*d_model)

    def _pad(v):
        return jnp.pad(v, (0, vec_w - v.shape[0]))

    vec_stack = jnp.stack([
        jnp.stack([_pad(p["linear1_b"]), _pad(p["linear2_b"]),
                   _pad(p["ln_gamma"]), _pad(p["ln_beta"])])
        for p in layers])                                       # (L, 4, 2*d_ff)

    rw = params["readout_w"].T                                  # (d_model, r)
    rb = params["readout_b"][None, :]                           # (1, r)
    return w1_stack, w2_stack, vec_stack, rw, rb


# --------------------------------- wrapper --------------------------------- #

def _choose_tm(n, tm_max=1024):
    """One tile for tiny n; otherwise an even number (>=2) of tiles (both v7x
    TensorCores get work) with tm <= ~tm_max rows, minimizing row padding."""
    if n <= 64:
        return _round_up(max(n, 8), 8)
    n_tiles = max(2, 2 * _cdiv(n, 2 * tm_max))
    return _round_up(_cdiv(n, n_tiles), 8)


def decoder_module_forward(x, params, *, numerical=False, tm=None):
    """x: [batch, seq, d_model] -> [batch, seq, readout_dim]."""
    b, s, d = x.shape
    n = b * s
    h = x.reshape(n, d)

    w1_stack, w2_stack, vec_stack, rw, rb = pack_params(params)
    n_layers, d_model = w1_stack.shape[0], w1_stack.shape[1]
    d_ff = w1_stack.shape[2] // 2
    r = rw.shape[1]
    assert d_model == d

    if tm is None:
        tm = _choose_tm(n)
    tm = _round_up(tm, 8)
    n_pad = tm * _cdiv(n, tm)
    if n_pad != n:                           # pad, never drop, trailing tokens
        h = jnp.pad(h, ((0, n_pad - n), (0, 0)))
    grid = (n_pad // tm,)

    def _full(shape):
        # Whole-array block with constant index_map: DMA'd once, never re-fetched.
        return pl.BlockSpec(shape, lambda i, _nd=len(shape): (0,) * _nd)

    kernel = _make_decoder_kernel(n_layers, d_model, d_ff, numerical)
    out = pl.pallas_call(
        kernel,
        out_shape=jax.ShapeDtypeStruct((n_pad, r), x.dtype),
        grid=grid,
        in_specs=[
            pl.BlockSpec((tm, d), lambda i: (i, 0)),   # activation tile
            _full(w1_stack.shape),
            _full(w2_stack.shape),
            _full(vec_stack.shape),
            _full(rw.shape),
            _full(rb.shape),
        ],
        # Unpadded readout width: block last dim == full array dim (legal), and
        # half the HBM writeback bytes vs the old 64->128 lane padding.
        out_specs=pl.BlockSpec((tm, r), lambda i: (i, 0)),
        compiler_params=pltpu.CompilerParams(
            dimension_semantics=("parallel",)),
    )(h, w1_stack, w2_stack, vec_stack, rw, rb)

    return out[:n, :].reshape(b, s, r)


# ------------------------------ parameter init ------------------------------ #

def init_params(key, d_model, d_ff, readout_dim, n_layers):
    """PyTorch nn.Linear / nn.LayerNorm default init, PyTorch (out, in) layout."""
    def linear(k, fan_out, fan_in):
        kw, kb = jax.random.split(k)
        bound = 1.0 / jnp.sqrt(jnp.float32(fan_in))
        w = jax.random.uniform(kw, (fan_out, fan_in), jnp.float32, -bound, bound)
        bvec = jax.random.uniform(kb, (fan_out,), jnp.float32, -bound, bound)
        return w, bvec

    layers = []
    for _ in range(n_layers):
        key, k1, k2 = jax.random.split(key, 3)
        w1, b1 = linear(k1, 2 * d_ff, d_model)
        w2, b2 = linear(k2, 2 * d_model, d_ff)
        layers.append(dict(linear1_w=w1, linear1_b=b1,
                           linear2_w=w2, linear2_b=b2,
                           ln_gamma=jnp.ones((d_model,), jnp.float32),
                           ln_beta=jnp.zeros((d_model,), jnp.float32)))
    key, kr = jax.random.split(key)
    rw, rb = linear(kr, readout_dim, d_model)
    return dict(layers=layers, readout_w=rw, readout_b=rb)


# ------------------ pure-JAX reference (unfused, PyTorch layout) ------------ #

def _reference_forward(x, params, numerical=False):
    """Direct transcription of the PyTorch module (eval mode, dropout identity)."""
    b, s, d = x.shape
    h = x.reshape(b * s, d).astype(jnp.float32)
    for p in params["layers"]:
        d_ff = p["linear1_w"].shape[0] // 2
        d_model = p["linear2_w"].shape[0] // 2
        z = h @ p["linear1_w"].T + p["linear1_b"]
        g = z[:, :d_ff] * jax.nn.sigmoid(z[:, d_ff:])                    # GLU
        z2 = g @ p["linear2_w"].T + p["linear2_b"]
        y = z2[:, :d_model] * jax.nn.sigmoid(z2[:, d_model:]) + h        # GLU + residual
        mean = jnp.mean(y, axis=-1, keepdims=True)
        var = jnp.mean((y - mean) ** 2, axis=-1, keepdims=True)
        h = (y - mean) / jnp.sqrt(var + LN_EPS) * p["ln_gamma"] + p["ln_beta"]
    out = h @ params["readout_w"].T + params["readout_b"]
    if numerical:
        out = jax.nn.sigmoid(out) + 1.0
    return out.reshape(b, s, -1)


# ----------------------------------- main ----------------------------------- #

if __name__ == "__main__":
    # config: d_model=32, d_ff_mult=4 -> d_ff=128, field_decoder_layers=2,
    # dropout=0.0, use_mup=False, embedding=None, readout_dim=64, numerical=False
    d_model, d_ff, n_layers, readout_dim = 32, 128, 2, 64
    batch, seq = 2, 8
    numerical = False

    key = jax.random.PRNGKey(0)
    kx, kp = jax.random.split(key)
    x = jax.random.normal(kx, (batch, seq, d_model), jnp.float32)
    params = init_params(kp, d_model, d_ff, readout_dim, n_layers)

    out = decoder_module_forward(x, params, numerical=numerical)
    out = jax.block_until_ready(out)

    ref = _reference_forward(x, params, numerical=numerical)
    assert out.shape == (batch, seq, readout_dim), out.shape
    max_err = float(jnp.max(jnp.abs(out - ref)))
    assert jnp.allclose(out, ref, atol=1e-4, rtol=1e-4), max_err

    print("KERNEL_OK")
</pallas_src>

<mosaic_0001>
module attributes {stable_mosaic.version = 11 : i64} {
  func.func @kernel(%arg0: i32, %arg1: memref<16x32xf32, #tpu.memory_space<vmem>>, %arg2: memref<2x32x256xf32, #tpu.memory_space<vmem>>, %arg3: memref<2x128x64xf32, #tpu.memory_space<vmem>>, %arg4: memref<2x4x256xf32, #tpu.memory_space<vmem>>, %arg5: memref<32x64xf32, #tpu.memory_space<vmem>>, %arg6: memref<1x64xf32, #tpu.memory_space<vmem>>, %arg7: memref<16x64xf32, #tpu.memory_space<vmem>>) attributes {dimension_semantics = [#tpu.dimension_semantics<parallel>], iteration_bounds = array<i64: 1>, scalar_prefetch = 0 : i64, scratch_operands = 0 : i64, tpu.core_type = #tpu.core_type<tc>, window_params = [{transform_indices = @transform_0, window_bounds = array<i64: 16, 32>}, {pipeline_mode = #tpu.pipeline_mode<synchronous>, transform_indices = @transform_1, window_bounds = array<i64: 2, 32, 256>}, {pipeline_mode = #tpu.pipeline_mode<synchronous>, transform_indices = @transform_2, window_bounds = array<i64: 2, 128, 64>}, {pipeline_mode = #tpu.pipeline_mode<synchronous>, transform_indices = @transform_3, window_bounds = array<i64: 2, 4, 256>}, {pipeline_mode = #tpu.pipeline_mode<synchronous>, transform_indices = @transform_4, window_bounds = array<i64: 32, 64>}, {pipeline_mode = #tpu.pipeline_mode<synchronous>, transform_indices = @transform_5, window_bounds = array<i64: 1, 64>}, {transform_indices = @transform_6, window_bounds = array<i64: 16, 64>}]} {
    %c0 = arith.constant 0 : index
    %c0_0 = arith.constant 0 : index
    %0 = vector.load %arg1[%c0, %c0_0] : memref<16x32xf32, #tpu.memory_space<vmem>>, vector<16x32xf32>
    %c0_1 = arith.constant 0 : index
    %c0_2 = arith.constant 0 : index
    %c0_3 = arith.constant 0 : index
    %1 = vector.load %arg2[%c0_1, %c0_2, %c0_3] : memref<2x32x256xf32, #tpu.memory_space<vmem>>, vector<1x32x256xf32>
    %2 = vector.shape_cast %1 : vector<1x32x256xf32> to vector<32x256xf32>
    %cst = arith.constant dense<0.000000e+00> : vector<16x256xf32>
    %3 = tpu.matmul %0, %2, %cst {dimension_numbers = #tpu.dot_dimension_numbers<[1], [0], [0], [1], [0, 0, 1, 1], [], []>} : vector<16x32xf32>, vector<32x256xf32>, vector<16x256xf32> -> vector<16x256xf32>
    %c0_4 = arith.constant 0 : index
    %c0_5 = arith.constant 0 : index
    %c0_6 = arith.constant 0 : index
    %4 = vector.load %arg4[%c0_4, %c0_5, %c0_6] : memref<2x4x256xf32, #tpu.memory_space<vmem>>, vector<1x1x256xf32>
    %5 = vector.shape_cast %4 : vector<1x1x256xf32> to vector<1x256xf32>
    %6 = vector.broadcast %5 : vector<1x256xf32> to vector<16x256xf32>
    %7 = arith.addf %3, %6 : vector<16x256xf32>
    %8 = vector.extract_strided_slice %7 {offsets = [0, 0], sizes = [16, 128], strides = [1, 1]} : vector<16x256xf32> to vector<16x128xf32>
    %9 = vector.extract_strided_slice %7 {offsets = [0, 128], sizes = [16, 128], strides = [1, 1]} : vector<16x256xf32> to vector<16x128xf32>
    %10 = arith.negf %9 : vector<16x128xf32>
    %11 = math.exp %10 : vector<16x128xf32>
    %cst_7 = arith.constant 1.000000e+00 : f32
    %12 = vector.broadcast %cst_7 : f32 to vector<16x128xf32>
    %13 = arith.addf %12, %11 : vector<16x128xf32>
    %14 = arith.divf %12, %13 : vector<16x128xf32>
    %15 = arith.mulf %8, %14 : vector<16x128xf32>
    %c0_8 = arith.constant 0 : index
    %c0_9 = arith.constant 0 : index
    %c0_10 = arith.constant 0 : index
    %16 = vector.load %arg3[%c0_8, %c0_9, %c0_10] : memref<2x128x64xf32, #tpu.memory_space<vmem>>, vector<1x128x64xf32>
    %17 = vector.shape_cast %16 : vector<1x128x64xf32> to vector<128x64xf32>
    %cst_11 = arith.constant dense<0.000000e+00> : vector<16x64xf32>
    %18 = tpu.matmul %15, %17, %cst_11 {dimension_numbers = #tpu.dot_dimension_numbers<[1], [0], [0], [1], [0, 0, 1, 1], [], []>} : vector<16x128xf32>, vector<128x64xf32>, vector<16x64xf32> -> vector<16x64xf32>
    %c0_12 = arith.constant 0 : index
    %c1 = arith.constant 1 : index
    %c0_13 = arith.constant 0 : index
    %19 = vector.load %arg4[%c0_12, %c1, %c0_13] : memref<2x4x256xf32, #tpu.memory_space<vmem>>, vector<1x1x64xf32>
    %20 = vector.shape_cast %19 : vector<1x1x64xf32> to vector<1x64xf32>
    %21 = vector.broadcast %20 : vector<1x64xf32> to vector<16x64xf32>
    %22 = arith.addf %18, %21 : vector<16x64xf32>
    %23 = vector.extract_strided_slice %22 {offsets = [0, 0], sizes = [16, 32], strides = [1, 1]} : vector<16x64xf32> to vector<16x32xf32>
    %24 = vector.extract_strided_slice %22 {offsets = [0, 32], sizes = [16, 32], strides = [1, 1]} : vector<16x64xf32> to vector<16x32xf32>
    %25 = arith.negf %24 : vector<16x32xf32>
    %26 = math.exp %25 : vector<16x32xf32>
    %cst_14 = arith.constant 1.000000e+00 : f32
    %27 = vector.broadcast %cst_14 : f32 to vector<16x32xf32>
    %28 = arith.addf %27, %26 : vector<16x32xf32>
    %29 = arith.divf %27, %28 : vector<16x32xf32>
    %30 = arith.mulf %23, %29 : vector<16x32xf32>
    %31 = arith.addf %30, %0 : vector<16x32xf32>
    %c0_15 = arith.constant 0 : index
    %c2 = arith.constant 2 : index
    %c0_16 = arith.constant 0 : index
    %32 = vector.load %arg4[%c0_15, %c2, %c0_16] : memref<2x4x256xf32, #tpu.memory_space<vmem>>, vector<1x1x32xf32>
    %33 = vector.shape_cast %32 : vector<1x1x32xf32> to vector<1x32xf32>
    %c0_17 = arith.constant 0 : index
    %c3 = arith.constant 3 : index
    %c0_18 = arith.constant 0 : index
    %34 = vector.load %arg4[%c0_17, %c3, %c0_18] : memref<2x4x256xf32, #tpu.memory_space<vmem>>, vector<1x1x32xf32>
    %35 = vector.shape_cast %34 : vector<1x1x32xf32> to vector<1x32xf32>
    %cst_19 = arith.constant dense<0.000000e+00> : vector<16xf32>
    %36 = vector.multi_reduction <add>, %31, %cst_19 [1] : vector<16x32xf32> to vector<16xf32>
    %37 = vector.shape_cast %36 : vector<16xf32> to vector<16x1xf32>
    %cst_20 = arith.constant 3.200000e+01 : f32
    %38 = vector.broadcast %cst_20 : f32 to vector<16x1xf32>
    %39 = arith.divf %37, %38 : vector<16x1xf32>
    %40 = arith.mulf %31, %31 : vector<16x32xf32>
    %cst_21 = arith.constant dense<0.000000e+00> : vector<16xf32>
    %41 = vector.multi_reduction <add>, %40, %cst_21 [1] : vector<16x32xf32> to vector<16xf32>
    %42 = vector.shape_cast %41 : vector<16xf32> to vector<16x1xf32>
    %cst_22 = arith.constant 3.200000e+01 : f32
    %43 = vector.broadcast %cst_22 : f32 to vector<16x1xf32>
    %44 = arith.divf %42, %43 : vector<16x1xf32>
    %45 = arith.mulf %39, %39 : vector<16x1xf32>
    %46 = arith.subf %44, %45 : vector<16x1xf32>
    %cst_23 = arith.constant 0.000000e+00 : f32
    %47 = vector.broadcast %cst_23 : f32 to vector<16x1xf32>
    %48 = arith.maximumf %46, %47 : vector<16x1xf32>
    %49 = vector.broadcast %39 : vector<16x1xf32> to vector<16x32xf32>
    %50 = arith.subf %31, %49 : vector<16x32xf32>
    %cst_24 = arith.constant 9.99999974E-6 : f32
    %51 = vector.broadcast %cst_24 : f32 to vector<16x1xf32>
    %52 = arith.addf %48, %51 : vector<16x1xf32>
    %53 = math.rsqrt %52 : vector<16x1xf32>
    %54 = vector.broadcast %53 : vector<16x1xf32> to vector<16x32xf32>
    %55 = vector.broadcast %33 : vector<1x32xf32> to vector<16x32xf32>
    %56 = arith.mulf %54, %55 : vector<16x32xf32>
    %57 = arith.mulf %50, %56 : vector<16x32xf32>
    %58 = vector.broadcast %35 : vector<1x32xf32> to vector<16x32xf32>
    %59 = arith.addf %57, %58 : vector<16x32xf32>
    %c1_25 = arith.constant 1 : index
    %c0_26 = arith.constant 0 : index
    %c0_27 = arith.constant 0 : index
    %60 = vector.load %arg2[%c1_25, %c0_26, %c0_27] : memref<2x32x256xf32, #tpu.memory_space<vmem>>, vector<1x32x256xf32>
    %61 = vector.shape_cast %60 : vector<1x32x256xf32> to vector<32x256xf32>
    %cst_28 = arith.constant dense<0.000000e+00> : vector<16x256xf32>
    %62 = tpu.matmul %59, %61, %cst_28 {dimension_numbers = #tpu.dot_dimension_numbers<[1], [0], [0], [1], [0, 0, 1, 1], [], []>} : vector<16x32xf32>, vector<32x256xf32>, vector<16x256xf32> -> vector<16x256xf32>
    %c1_29 = arith.constant 1 : index
    %c0_30 = arith.constant 0 : index
    %c0_31 = arith.constant 0 : index
    %63 = vector.load %arg4[%c1_29, %c0_30, %c0_31] : memref<2x4x256xf32, #tpu.memory_space<vmem>>, vector<1x1x256xf32>
    %64 = vector.shape_cast %63 : vector<1x1x256xf32> to vector<1x256xf32>
    %65 = vector.broadcast %64 : vector<1x256xf32> to vector<16x256xf32>
    %66 = arith.addf %62, %65 : vector<16x256xf32>
    %67 = vector.extract_strided_slice %66 {offsets = [0, 0], sizes = [16, 128], strides = [1, 1]} : vector<16x256xf32> to vector<16x128xf32>
    %68 = vector.extract_strided_slice %66 {offsets = [0, 128], sizes = [16, 128], strides = [1, 1]} : vector<16x256xf32> to vector<16x128xf32>
    %69 = arith.negf %68 : vector<16x128xf32>
    %70 = math.exp %69 : vector<16x128xf32>
    %cst_32 = arith.constant 1.000000e+00 : f32
    %71 = vector.broadcast %cst_32 : f32 to vector<16x128xf32>
    %72 = arith.addf %71, %70 : vector<16x128xf32>
    %73 = arith.divf %71, %72 : vector<16x128xf32>
    %74 = arith.mulf %67, %73 : vector<16x128xf32>
    %c1_33 = arith.constant 1 : index
    %c0_34 = arith.constant 0 : index
    %c0_35 = arith.constant 0 : index
    %75 = vector.load %arg3[%c1_33, %c0_34, %c0_35] : memref<2x128x64xf32, #tpu.memory_space<vmem>>, vector<1x128x64xf32>
    %76 = vector.shape_cast %75 : vector<1x128x64xf32> to vector<128x64xf32>
    %cst_36 = arith.constant dense<0.000000e+00> : vector<16x64xf32>
    %77 = tpu.matmul %74, %76, %cst_36 {dimension_numbers = #tpu.dot_dimension_numbers<[1], [0], [0], [1], [0, 0, 1, 1], [], []>} : vector<16x128xf32>, vector<128x64xf32>, vector<16x64xf32> -> vector<16x64xf32>
    %c1_37 = arith.constant 1 : index
    %c1_38 = arith.constant 1 : index
    %c0_39 = arith.constant 0 : index
    %78 = vector.load %arg4[%c1_37, %c1_38, %c0_39] : memref<2x4x256xf32, #tpu.memory_space<vmem>>, vector<1x1x64xf32>
    %79 = vector.shape_cast %78 : vector<1x1x64xf32> to vector<1x64xf32>
    %80 = vector.broadcast %79 : vector<1x64xf32> to vector<16x64xf32>
    %81 = arith.addf %77, %80 : vector<16x64xf32>
    %82 = vector.extract_strided_slice %81 {offsets = [0, 0], sizes = [16, 32], strides = [1, 1]} : vector<16x64xf32> to vector<16x32xf32>
    %83 = vector.extract_strided_slice %81 {offsets = [0, 32], sizes = [16, 32], strides = [1, 1]} : vector<16x64xf32> to vector<16x32xf32>
    %84 = arith.negf %83 : vector<16x32xf32>
    %85 = math.exp %84 : vector<16x32xf32>
    %cst_40 = arith.constant 1.000000e+00 : f32
    %86 = vector.broadcast %cst_40 : f32 to vector<16x32xf32>
    %87 = arith.addf %86, %85 : vector<16x32xf32>
    %88 = arith.divf %86, %87 : vector<16x32xf32>
    %89 = arith.mulf %82, %88 : vector<16x32xf32>
    %90 = arith.addf %89, %59 : vector<16x32xf32>
    %c1_41 = arith.constant 1 : index
    %c2_42 = arith.constant 2 : index
    %c0_43 = arith.constant 0 : index
    %91 = vector.load %arg4[%c1_41, %c2_42, %c0_43] : memref<2x4x256xf32, #tpu.memory_space<vmem>>, vector<1x1x32xf32>
    %92 = vector.shape_cast %91 : vector<1x1x32xf32> to vector<1x32xf32>
    %c1_44 = arith.constant 1 : index
    %c3_45 = arith.constant 3 : index
    %c0_46 = arith.constant 0 : index
    %93 = vector.load %arg4[%c1_44, %c3_45, %c0_46] : memref<2x4x256xf32, #tpu.memory_space<vmem>>, vector<1x1x32xf32>
    %94 = vector.shape_cast %93 : vector<1x1x32xf32> to vector<1x32xf32>
    %cst_47 = arith.constant dense<0.000000e+00> : vector<16xf32>
    %95 = vector.multi_reduction <add>, %90, %cst_47 [1] : vector<16x32xf32> to vector<16xf32>
    %96 = vector.shape_cast %95 : vector<16xf32> to vector<16x1xf32>
    %cst_48 = arith.constant 3.200000e+01 : f32
    %97 = vector.broadcast %cst_48 : f32 to vector<16x1xf32>
    %98 = arith.divf %96, %97 : vector<16x1xf32>
    %99 = arith.mulf %90, %90 : vector<16x32xf32>
    %cst_49 = arith.constant dense<0.000000e+00> : vector<16xf32>
    %100 = vector.multi_reduction <add>, %99, %cst_49 [1] : vector<16x32xf32> to vector<16xf32>
    %101 = vector.shape_cast %100 : vector<16xf32> to vector<16x1xf32>
    %cst_50 = arith.constant 3.200000e+01 : f32
    %102 = vector.broadcast %cst_50 : f32 to vector<16x1xf32>
    %103 = arith.divf %101, %102 : vector<16x1xf32>
    %104 = arith.mulf %98, %98 : vector<16x1xf32>
    %105 = arith.subf %103, %104 : vector<16x1xf32>
    %cst_51 = arith.constant 0.000000e+00 : f32
    %106 = vector.broadcast %cst_51 : f32 to vector<16x1xf32>
    %107 = arith.maximumf %105, %106 : vector<16x1xf32>
    %108 = vector.broadcast %98 : vector<16x1xf32> to vector<16x32xf32>
    %109 = arith.subf %90, %108 : vector<16x32xf32>
    %cst_52 = arith.constant 9.99999974E-6 : f32
    %110 = vector.broadcast %cst_52 : f32 to vector<16x1xf32>
    %111 = arith.addf %107, %110 : vector<16x1xf32>
    %112 = math.rsqrt %111 : vector<16x1xf32>
    %113 = vector.broadcast %112 : vector<16x1xf32> to vector<16x32xf32>
    %114 = vector.broadcast %92 : vector<1x32xf32> to vector<16x32xf32>
    %115 = arith.mulf %113, %114 : vector<16x32xf32>
    %116 = arith.mulf %109, %115 : vector<16x32xf32>
    %117 = vector.broadcast %94 : vector<1x32xf32> to vector<16x32xf32>
    %118 = arith.addf %116, %117 : vector<16x32xf32>
    %c0_53 = arith.constant 0 : index
    %c0_54 = arith.constant 0 : index
    %119 = vector.load %arg5[%c0_53, %c0_54] : memref<32x64xf32, #tpu.memory_space<vmem>>, vector<32x64xf32>
    %cst_55 = arith.constant dense<0.000000e+00> : vector<16x64xf32>
    %120 = tpu.matmul %118, %119, %cst_55 {dimension_numbers = #tpu.dot_dimension_numbers<[1], [0], [0], [1], [0, 0, 1, 1], [], []>} : vector<16x32xf32>, vector<32x64xf32>, vector<16x64xf32> -> vector<16x64xf32>
    %c0_56 = arith.constant 0 : index
    %c0_57 = arith.constant 0 : index
    %121 = vector.load %arg6[%c0_56, %c0_57] : memref<1x64xf32, #tpu.memory_space<vmem>>, vector<1x64xf32>
    %122 = vector.broadcast %121 : vector<1x64xf32> to vector<16x64xf32>
    %123 = arith.addf %120, %122 : vector<16x64xf32>
    %c0_58 = arith.constant 0 : index
    %c0_59 = arith.constant 0 : index
    %124 = vector.load %arg7[%c0_58, %c0_59] : memref<16x64xf32, #tpu.memory_space<vmem>>, vector<16x64xf32>
    tpu.vector_store %arg7[%c0_58, %c0_59], %123 {strides = array<i32>} : memref<16x64xf32, #tpu.memory_space<vmem>>, vector<16x64xf32>,
    return
  }
  func.func @transform_0(%arg0: i32) -> (i32, i32) {
    %c0_i32 = arith.constant 0 : i32
    %c0_i32_0 = arith.constant 0 : i32
    return %arg0, %c0_i32 : i32, i32
  }
  func.func @transform_1(%arg0: i32) -> (i32, i32, i32) {
    %c0_i32 = arith.constant 0 : i32
    %c0_i32_0 = arith.constant 0 : i32
    %c0_i32_1 = arith.constant 0 : i32
    %c0_i32_2 = arith.constant 0 : i32
    return %c0_i32, %c0_i32_0, %c0_i32_1 : i32, i32, i32
  }
  func.func @transform_2(%arg0: i32) -> (i32, i32, i32) {
    %c0_i32 = arith.constant 0 : i32
    %c0_i32_0 = arith.constant 0 : i32
    %c0_i32_1 = arith.constant 0 : i32
    %c0_i32_2 = arith.constant 0 : i32
    return %c0_i32, %c0_i32_0, %c0_i32_1 : i32, i32, i32
  }
  func.func @transform_3(%arg0: i32) -> (i32, i32, i32) {
    %c0_i32 = arith.constant 0 : i32
    %c0_i32_0 = arith.constant 0 : i32
    %c0_i32_1 = arith.constant 0 : i32
    %c0_i32_2 = arith.constant 0 : i32
    return %c0_i32, %c0_i32_0, %c0_i32_1 : i32, i32, i32
  }
  func.func @transform_4(%arg0: i32) -> (i32, i32) {
    %c0_i32 = arith.constant 0 : i32
    %c0_i32_0 = arith.constant 0 : i32
    %c0_i32_1 = arith.constant 0 : i32
    return %c0_i32, %c0_i32_0 : i32, i32
  }
  func.func @transform_5(%arg0: i32) -> (i32, i32) {
    %c0_i32 = arith.constant 0 : i32
    %c0_i32_0 = arith.constant 0 : i32
    %c0_i32_1 = arith.constant 0 : i32
    return %c0_i32, %c0_i32_0 : i32, i32
  }
  func.func @transform_6(%arg0: i32) -> (i32, i32) {
    %c0_i32 = arith.constant 0 : i32
    %c0_i32_0 = arith.constant 0 : i32
    return %arg0, %c0_i32 : i32, i32
  }
}

</mosaic_0001>

<llo_original>
// kernel: tpu_custom_call.1
$region0: #{tpu_custom_call.1}
  #allocation0 [shape = 'u32[]', space=smem, size = 0x4, offset = 0x4, fixed_abs, tag = 'smem constant byte address 0x4 - core index']
  #allocation1 [shape = 'u32[144,128]{1,0:T(1,128)}', space=vmem, size = 0x12000, scoped, tag = 'internal scratch']
  %s0 = inlined_call_operand.vmem [shape: f32[16,32], index: 0, kind: input, shape index: {}]
  %s1 = inlined_call_operand.vmem [shape: f32[2,32,256], index: 1, kind: input, shape index: {}]
  %s2 = inlined_call_operand.vmem [shape: f32[2,128,64], index: 2, kind: input, shape index: {}]
  %s3 = inlined_call_operand.vmem [shape: f32[2,4,256], index: 3, kind: input, shape index: {}]
  %s4 = inlined_call_operand.vmem [shape: f32[32,64], index: 4, kind: input, shape index: {}]
  %s5 = inlined_call_operand.vmem [shape: f32[1,64], index: 5, kind: input, shape index: {}]
  %s6 = inlined_call_operand.hbm [shape: f32[16,64], index: 6, kind: output, shape index: {}]
  %s7 = sld [smem:[#allocation0]]
  $region34: #{tpu_custom_call.1} parent=0
    _
  %s9 = ssub.s32 1, %s7
  %s10 = scalar_select 0, %s9, %s7
  $region1: #{tpu_custom_call.1} parent=0
    #allocation2 [shape = 'u8[8192]{0}', space=vmem, size = 0x2000, scoped, tag = 'output window, operand 0, single buffered']
    #allocation3 [shape = 's32[1]{0}', space=sflag, size = 0x4, scoped, tag = 'scoped memory for tpu_custom_call.1']
    %11 = vsyncpa [#allocation3], 0
    // Predicated region
    $region2: #{tpu_custom_call.1} parent=1 // pred_check
      _
    $region3: #{tpu_custom_call.1} parent=1 // pred_check_branch
      %13 = sbr.rel (0) target = $region5
    $region4: #{tpu_custom_call.1} parent=1 // pred_region
      _
    $region5: #{tpu_custom_call.1} parent=1 // pred_fallthru
      _
    // Predicated region
    $region6: #{tpu_custom_call.1} parent=1 // pred_check
      _
    $region7: #{tpu_custom_call.1} parent=1 // pred_check_branch
      %15 = sbr.rel (0) target = $region9
    $region8: #{tpu_custom_call.1} parent=1 // pred_region
      _
    $region9: #{tpu_custom_call.1} parent=1 // pred_fallthru
      _
    // Predicated region
    $region10: #{tpu_custom_call.1} parent=1 // pred_check
      _
    $region11: #{tpu_custom_call.1} parent=1 // pred_check_branch
      %17 = sbr.rel (0) target = $region13
    $region12: #{tpu_custom_call.1} parent=1 // pred_region
      _
    $region13: #{tpu_custom_call.1} parent=1 // pred_fallthru
      _
    // Predicated region
    $region14: #{tpu_custom_call.1} parent=1 // pred_check
      _
    $region15: #{tpu_custom_call.1} parent=1 // pred_check_branch
      %19 = sbr.rel (0) target = $region17
    $region16: #{tpu_custom_call.1} parent=1 // pred_region
      _
    $region17: #{tpu_custom_call.1} parent=1 // pred_fallthru
      _
    // Predicated region
    $region18: #{tpu_custom_call.1} parent=1 // pred_check
      _
    $region19: #{tpu_custom_call.1} parent=1 // pred_check_branch
      %21 = sbr.rel (0) target = $region21
    $region20: #{tpu_custom_call.1} parent=1 // pred_region
      _
    $region21: #{tpu_custom_call.1} parent=1 // pred_fallthru
      _
    // Predicated region
    $region22: #{tpu_custom_call.1} parent=1 // pred_check
      _
    $region23: #{tpu_custom_call.1} parent=1 // pred_check_branch
      %23 = sbr.rel (0) target = $region25
    $region24: #{tpu_custom_call.1} parent=1 // pred_region
      _
    $region25: #{tpu_custom_call.1} parent=1 // pred_fallthru
      _
    %v24 = vld [vmem:[%s0] sm:$0xff]
    %v25 = vld [vmem:[%s0 + $0x8] sm:$0xff]
    %v26 = vld [vmem:[%s1] sm:$0xff]
    %v27 = vld [vmem:[%s1 + $0x8] sm:$0xff]
    %v28 = vld [vmem:[%s1 + $0x10] sm:$0xff]
    %v29 = vld [vmem:[%s1 + $0x18] sm:$0xff]
    %v30 = vld [vmem:[%s1 + $0x20] sm:$0xff]
    %v31 = vld [vmem:[%s1 + $0x28] sm:$0xff]
    %v32 = vld [vmem:[%s1 + $0x30] sm:$0xff]
    %v33 = vld [vmem:[%s1 + $0x38] sm:$0xff]
    %v34 = vld [vmem:[%s3] ss:$4 sm:$0x3]
    %v36 = vlaneseq
    %v37 = vshrl.u32 %v36, 7
    %v38 = vsub.s32 0, %v37
    %v39 = vrot.slane %v34, %v38
    %v40 = vlaneseq
    %v41 = vshrl.u32 %v40, 7
    %v42 = vsub.s32 1, %v41
    %v43 = vrot.slane %v34, %v42
    %vm46 = vcmask 261120
    %v48 = vsel %vm46, %v24, 0
    %v51 = vsel %vm46, %v25, 0
    %53 = vmatprep.subr.mxu0 %v27
    %54 = vmatpush1.msra.mxu0 %v26
    %55 = vmatprep.subr.mxu0 %v29
    %56 = vmatpush1.msra.mxu0 %v28
    %57 = vmatprep.subr.mxu0 %v31
    %58 = vmatpush1.msra.mxu0 %v30
    %59 = vmatprep.subr.mxu0 %v33
    %60 = vmatpush1.msra.mxu0 %v32
    %61 = vmatprep.subr.mxu0 0.0
    %62 = vmatpush1.msra.mxu0 0.0
    %63 = vmatprep.subr.mxu0 0.0
    %64 = vmatpush1.msra.mxu0 0.0
    %65 = vmatprep.subr.mxu0 0.0
    %66 = vmatpush1.msra.mxu0 0.0
    %67 = vmatprep.subr.mxu0 0.0
    %68 = vmatpush1.msra.mxu0 0.0
    %69 = vmatprep.subr.mxu0 0.0
    %70 = vmatpush1.msra.mxu0 0.0
    %71 = vmatprep.subr.mxu0 0.0
    %72 = vmatpush1.msra.mxu0 0.0
    %73 = vmatprep.subr.mxu0 0.0
    %74 = vmatpush1.msra.mxu0 0.0
    %75 = vmatprep.subr.mxu0 0.0
    %76 = vmatpush1.msra.mxu0 0.0
    %77 = vmatprep.subr.mxu0 0.0
    %78 = vmatpush1.msra.mxu0 0.0
    %79 = vmatprep.subr.mxu0 0.0
    %80 = vmatpush1.msra.mxu0 0.0
    %81 = vmatprep.subr.mxu0 0.0
    %82 = vmatpush1.msra.mxu0 0.0
    %83 = vmatprep.subr.mxu0 0.0
    %84 = vmatpush1.msra.mxu0 0.0
    %85 = vmatprep.subr.mxu0 0.0
    %86 = vmatpush1.msra.mxu0 0.0
    %87 = vmatprep.subr.mxu0 0.0
    %88 = vmatpush1.msra.mxu0 0.0
    %89 = vmatprep.subr.mxu0 0.0
    %90 = vmatpush1.msra.mxu0 0.0
    %91 = vmatprep.subr.mxu0 0.0
    %92 = vmatpush1.msra.mxu0 0.0
    %93 = vmatprep.subr.mxu0 0.0
    %94 = vmatpush1.msra.mxu0 0.0
    %95 = vmatprep.subr.mxu0 0.0
    %96 = vmatpush1.msra.mxu0 0.0
    %97 = vmatprep.subr.mxu0 0.0
    %98 = vmatpush1.msra.mxu0 0.0
    %99 = vmatprep.subr.mxu0 0.0
    %100 = vmatpush1.msra.mxu0 0.0
    %101 = vmatprep.subr.mxu0 0.0
    %102 = vmatpush1.msra.mxu0 0.0
    %103 = vmatprep.subr.mxu0 0.0
    %104 = vmatpush1.msra.mxu0 0.0
    %105 = vmatprep.subr.mxu0 0.0
    %106 = vmatpush1.msra.mxu0 0.0
    %107 = vmatprep.subr.mxu0 0.0
    %108 = vmatpush1.msra.mxu0 0.0
    %109 = vmatprep.subr.mxu0 0.0
    %110 = vmatpush1.msra.mxu0 0.0
    %111 = vmatprep.subr.mxu0 0.0
    %112 = vmatpush1.msra.mxu0 0.0
    %113 = vmatprep.subr.mxu0 0.0
    %114 = vmatpush1.msra.mxu0 0.0
    %115 = vmatprep.subr.mxu0 0.0
    %116 = vmatpush1.msra.mxu0 0.0
    %117 = vmatprep.mubr.f32.mxu0 0.0
    %118 = vmatmul.mubr.f32.gmra.mrb[0].mxu0 %v48
    %v119 = vpop.f32.mrb[0].mxu0
    %v120 = vadd.f32 %v39, %v119
    %v121 = vpop.f32.mrb[0].mxu0
    %v122 = vadd.f32 %v43, %v121
    %123 = vmatprep.mubr.f32.mxu0 0.0
    %124 = vmatmul.mubr.f32.gmra.mrb[0].mxu0 %v51
    %v125 = vpop.f32.mrb[0].mxu0
    %v126 = vadd.f32 %v39, %v125
    %v127 = vpop.f32.mrb[0].mxu0
    %v128 = vadd.f32 %v43, %v127
    %129 = vdwg.mxu0
    %v130 = vxor.u32 %v122, 2147483648
    %v131 = vxor.u32 %v128, 2147483648
    %v132 = vmul.f32 %v130, 1.442695
    %v133 = vpow.pop %v132
    %v134 = vmul.f32 %v131, 1.442695
    %v135 = vpow.pop %v134
    %v136 = vadd.f32 %v133, 1.0
    %v137 = vadd.f32 %v135, 1.0
    %v138 = vrcp.pop %v136
    %v139 = vmul.f32 1.0, %v138
    %v140 = vrcp.pop %v137
    %v141 = vmul.f32 1.0, %v140
    %v142 = vmul.f32 %v120, %v139
    %v143 = vmul.f32 %v126, %v141
    %v144 = vld [vmem:[%s2] sm:$0xff]
    %v145 = vld [vmem:[%s2 + $0x8] sm:$0xff]
    %v146 = vld [vmem:[%s2 + $0x10] sm:$0xff]
    %v147 = vld [vmem:[%s2 + $0x18] sm:$0xff]
    %v148 = vld [vmem:[%s2 + $0x20] sm:$0xff]
    %v149 = vld [vmem:[%s2 + $0x28] sm:$0xff]
    %v150 = vld [vmem:[%s2 + $0x30] sm:$0xff]
    %v151 = vld [vmem:[%s2 + $0x38] sm:$0xff]
    %v152 = vld [vmem:[%s2 + $0x40] sm:$0xff]
    %v153 = vld [vmem:[%s2 + $0x48] sm:$0xff]
    %v154 = vld [vmem:[%s2 + $0x50] sm:$0xff]
    %v155 = vld [vmem:[%s2 + $0x58] sm:$0xff]
    %v156 = vld [vmem:[%s2 + $0x60] sm:$0xff]
    %v157 = vld [vmem:[%s2 + $0x68] sm:$0xff]
    %v158 = vld [vmem:[%s2 + $0x70] sm:$0xff]
    %v159 = vld [vmem:[%s2 + $0x78] sm:$0xff]
    %v160 = vld [vmem:[%s3 + $0x1] sm:$0x1]
    %v161 = vlaneseq
    %v162 = vshrl.u32 %v161, 7
    %v163 = vsub.s32 0, %v162
    %v164 = vrot.slane %v160, %v163
    %165 = vmatprep.subr.mxu0 0.0
    %166 = vmatpush1.msra.mxu0 %v144
    %167 = vmatprep.subr.mxu0 0.0
    %168 = vmatpush1.msra.mxu0 %v145
    %169 = vmatprep.subr.mxu0 0.0
    %170 = vmatpush1.msra.mxu0 %v146
    %171 = vmatprep.subr.mxu0 0.0
    %172 = vmatpush1.msra.mxu0 %v147
    %173 = vmatprep.subr.mxu0 0.0
    %174 = vmatpush1.msra.mxu0 %v148
    %175 = vmatprep.subr.mxu0 0.0
    %176 = vmatpush1.msra.mxu0 %v149
    %177 = vmatprep.subr.mxu0 0.0
    %178 = vmatpush1.msra.mxu0 %v150
    %179 = vmatprep.subr.mxu0 0.0
    %180 = vmatpush1.msra.mxu0 %v151
    %181 = vmatprep.subr.mxu0 0.0
    %182 = vmatpush1.msra.mxu0 %v152
    %183 = vmatprep.subr.mxu0 0.0
    %184 = vmatpush1.msra.mxu0 %v153
    %185 = vmatprep.subr.mxu0 0.0
    %186 = vmatpush1.msra.mxu0 %v154
    %187 = vmatprep.subr.mxu0 0.0
    %188 = vmatpush1.msra.mxu0 %v155
    %189 = vmatprep.subr.mxu0 0.0
    %190 = vmatpush1.msra.mxu0 %v156
    %191 = vmatprep.subr.mxu0 0.0
    %192 = vmatpush1.msra.mxu0 %v157
    %193 = vmatprep.subr.mxu0 0.0
    %194 = vmatpush1.msra.mxu0 %v158
    %195 = vmatprep.subr.mxu0 0.0
    %196 = vmatpush1.msra.mxu0 %v159
    %197 = vmatprep.subr.mxu0 0.0
    %198 = vmatpush1.msra.mxu0 0.0
    %199 = vmatprep.subr.mxu0 0.0
    %200 = vmatpush1.msra.mxu0 0.0
    %201 = vmatprep.subr.mxu0 0.0
    %202 = vmatpush1.msra.mxu0 0.0
    %203 = vmatprep.subr.mxu0 0.0
    %204 = vmatpush1.msra.mxu0 0.0
    %205 = vmatprep.subr.mxu0 0.0
    %206 = vmatpush1.msra.mxu0 0.0
    %207 = vmatprep.subr.mxu0 0.0
    %208 = vmatpush1.msra.mxu0 0.0
    %209 = vmatprep.subr.mxu0 0.0
    %210 = vmatpush1.msra.mxu0 0.0
    %211 = vmatprep.subr.mxu0 0.0
    %212 = vmatpush1.msra.mxu0 0.0
    %213 = vmatprep.subr.mxu0 0.0
    %214 = vmatpush1.msra.mxu0 0.0
    %215 = vmatprep.subr.mxu0 0.0
    %216 = vmatpush1.msra.mxu0 0.0
    %217 = vmatprep.subr.mxu0 0.0
    %218 = vmatpush1.msra.mxu0 0.0
    %219 = vmatprep.subr.mxu0 0.0
    %220 = vmatpush1.msra.mxu0 0.0
    %221 = vmatprep.subr.mxu0 0.0
    %222 = vmatpush1.msra.mxu0 0.0
    %223 = vmatprep.subr.mxu0 0.0
    %224 = vmatpush1.msra.mxu0 0.0
    %225 = vmatprep.subr.mxu0 0.0
    %226 = vmatpush1.msra.mxu0 0.0
    %227 = vmatprep.subr.mxu0 0.0
    %228 = vmatpush1.msra.mxu0 0.0
    %229 = vmatprep.mubr.f32.mxu0 0.0
    %230 = vmatmul.mubr.f32.gmra.mrb[0].mxu0 %v142
    %v231 = vpop.f32.mrb[0].mxu0
    %v232 = vadd.f32 %v164, %v231
    %v233 = vpop.f32.mrb[0].mxu0
    %234 = vmatprep.mubr.f32.mxu0 0.0
    %235 = vmatmul.mubr.f32.gmra.mrb[0].mxu0 %v143
    %v236 = vpop.f32.mrb[0].mxu0
    %v237 = vadd.f32 %v164, %v236
    %v238 = vpop.f32.mrb[0].mxu0
    %239 = vdwg.mxu0
    %v240 = vxor.u32 %v232, 2147483648
    %v241 = vxor.u32 %v237, 2147483648
    %v242 = vmul.f32 %v240, 1.442695
    %v243 = vpow.pop %v242
    %v244 = vmul.f32 %v241, 1.442695
    %v245 = vpow.pop %v244
    %v246 = vadd.f32 %v243, 1.0
    %v247 = vadd.f32 %v245, 1.0
    %v248 = vrcp.pop %v246
    %v249 = vmul.f32 1.0, %v248
    %v250 = vrcp.pop %v247
    %v251 = vmul.f32 1.0, %v250
    %254 = vrot.lane.b32.xlu0 %v249, 96
    %v255 = vpop.permute.xlu0 %254
    %256 = vrot.lane.b32.xlu0 %v251, 96
    %v257 = vpop.permute.xlu0 %256
    %v260 = vmul.f32 %v232, %v255
    %v261 = vmul.f32 %v237, %v257
    %v262 = vadd.f32 %v260, %v24
    %v263 = vadd.f32 %v261, %v25
    %v264 = vld [vmem:[%s3 + $0x2] sm:$0x1]
    %v265 = vld [vmem:[%s3 + $0x3] sm:$0x1]
    %v266 = vsel %vm46, %v262, 0.0
    %267 = vadd.xlane.f32.xlu0 %v266
    %v268 = vpop.xlane.xlu0 %267
    %v269 = vsel %vm46, %v263, 0.0
    %270 = vadd.xlane.f32.xlu0 %v269
    %v271 = vpop.xlane.xlu0 %270
    %v272 = vrcp.pop 32.0
    %v273 = vmul.f32 %v268, %v272
    %v274 = vmul.f32 %v271, %v272
    %v275 = vmul.f32 %v262, %v262
    %v276 = vmul.f32 %v263, %v263
    %v277 = vsel %vm46, %v275, 0.0
    %278 = vadd.xlane.f32.xlu0 %v277
    %v279 = vpop.xlane.xlu0 %278
    %v280 = vsel %vm46, %v276, 0.0
    %281 = vadd.xlane.f32.xlu0 %v280
    %v282 = vpop.xlane.xlu0 %281
    %v283 = vmul.f32 %v279, %v272
    %v284 = vmul.f32 %v282, %v272
    %v285 = vmul.f32 %v273, %v273
    %v286 = vmul.f32 %v274, %v274
    %v287 = vsub.f32 %v283, %v285
    %v288 = vsub.f32 %v284, %v286
    %v289 = vmax.f32 %v287, 0.0
    %v290 = vmax.f32 %v288, 0.0
    %v291 = vsub.f32 %v262, %v273
    %v292 = vsub.f32 %v263, %v274
    %v293 = vadd.f32 %v289, 1e-05
    %v294 = vadd.f32 %v290, 1e-05
    %v295 = vrsqrt.pop %v293
    %v296 = vrsqrt.pop %v294
    %v297 = vlaneseq
    %v298 = vshrl.u32 %v297, 7
    %v299 = vsub.s32 0, %v298
    %v300 = vrot.slane %v264, %v299
    %v301 = vmul.f32 %v295, %v300
    %v302 = vmul.f32 %v296, %v300
    %v303 = vmul.f32 %v291, %v301
    %v304 = vmul.f32 %v292, %v302
    %v305 = vlaneseq
    %v306 = vshrl.u32 %v305, 7
    %v307 = vsub.s32 0, %v306
    %v308 = vrot.slane %v265, %v307
    %v309 = vadd.f32 %v303, %v308
    %v310 = vadd.f32 %v304, %v308
    %s311 = scalar_lea.vmem %s1, 64
    %v312 = vld [vmem:[%s311] sm:$0xff]
    %v313 = vld [vmem:[%s311 + $0x8] sm:$0xff]
    %v314 = vld [vmem:[%s311 + $0x10] sm:$0xff]
    %v315 = vld [vmem:[%s311 + $0x18] sm:$0xff]
    %v316 = vld [vmem:[%s311 + $0x20] sm:$0xff]
    %v317 = vld [vmem:[%s311 + $0x28] sm:$0xff]
    %v318 = vld [vmem:[%s311 + $0x30] sm:$0xff]
    %v319 = vld [vmem:[%s311 + $0x38] sm:$0xff]
    %s320 = scalar_lea.vmem %s3, 8
    %v321 = vld [vmem:[%s320] ss:$4 sm:$0x3]
    %v323 = vlaneseq
    %v324 = vshrl.u32 %v323, 7
    %v325 = vsub.s32 0, %v324
    %v326 = vrot.slane %v321, %v325
    %v327 = vlaneseq
    %v328 = vshrl.u32 %v327, 7
    %v329 = vsub.s32 1, %v328
    %v330 = vrot.slane %v321, %v329
    %v334 = vsel %vm46, %v309, 0
    %v337 = vsel %vm46, %v310, 0
    %339 = vmatprep.subr.mxu0 %v313
    %340 = vmatpush1.msra.mxu0 %v312
    %341 = vmatprep.subr.mxu0 %v315
    %342 = vmatpush1.msra.mxu0 %v314
    %343 = vmatprep.subr.mxu0 %v317
    %344 = vmatpush1.msra.mxu0 %v316
    %345 = vmatprep.subr.mxu0 %v319
    %346 = vmatpush1.msra.mxu0 %v318
    %347 = vmatprep.subr.mxu0 0.0
    %348 = vmatpush1.msra.mxu0 0.0
    %349 = vmatprep.subr.mxu0 0.0
    %350 = vmatpush1.msra.mxu0 0.0
    %351 = vmatprep.subr.mxu0 0.0
    %352 = vmatpush1.msra.mxu0 0.0
    %353 = vmatprep.subr.mxu0 0.0
    %354 = vmatpush1.msra.mxu0 0.0
    %355 = vmatprep.subr.mxu0 0.0
    %356 = vmatpush1.msra.mxu0 0.0
    %357 = vmatprep.subr.mxu0 0.0
    %358 = vmatpush1.msra.mxu0 0.0
    %359 = vmatprep.subr.mxu0 0.0
    %360 = vmatpush1.msra.mxu0 0.0
    %361 = vmatprep.subr.mxu0 0.0
    %362 = vmatpush1.msra.mxu0 0.0
    %363 = vmatprep.subr.mxu0 0.0
    %364 = vmatpush1.msra.mxu0 0.0
    %365 = vmatprep.subr.mxu0 0.0
    %366 = vmatpush1.msra.mxu0 0.0
    %367 = vmatprep.subr.mxu0 0.0
    %368 = vmatpush1.msra.mxu0 0.0
    %369 = vmatprep.subr.mxu0 0.0
    %370 = vmatpush1.msra.mxu0 0.0
    %371 = vmatprep.subr.mxu0 0.0
    %372 = vmatpush1.msra.mxu0 0.0
    %373 = vmatprep.subr.mxu0 0.0
    %374 = vmatpush1.msra.mxu0 0.0
    %375 = vmatprep.subr.mxu0 0.0
    %376 = vmatpush1.msra.mxu0 0.0
    %377 = vmatprep.subr.mxu0 0.0
    %378 = vmatpush1.msra.mxu0 0.0
    %379 = vmatprep.subr.mxu0 0.0
    %380 = vmatpush1.msra.mxu0 0.0
    %381 = vmatprep.subr.mxu0 0.0
    %382 = vmatpush1.msra.mxu0 0.0
    %383 = vmatprep.subr.mxu0 0.0
    %384 = vmatpush1.msra.mxu0 0.0
    %385 = vmatprep.subr.mxu0 0.0
    %386 = vmatpush1.msra.mxu0 0.0
    %387 = vmatprep.subr.mxu0 0.0
    %388 = vmatpush1.msra.mxu0 0.0
    %389 = vmatprep.subr.mxu0 0.0
    %390 = vmatpush1.msra.mxu0 0.0
    %391 = vmatprep.subr.mxu0 0.0
    %392 = vmatpush1.msra.mxu0 0.0
    %393 = vmatprep.subr.mxu0 0.0
    %394 = vmatpush1.msra.mxu0 0.0
    %395 = vmatprep.subr.mxu0 0.0
    %396 = vmatpush1.msra.mxu0 0.0
    %397 = vmatprep.subr.mxu0 0.0
    %398 = vmatpush1.msra.mxu0 0.0
    %399 = vmatprep.subr.mxu0 0.0
    %400 = vmatpush1.msra.mxu0 0.0
    %401 = vmatprep.subr.mxu0 0.0
    %402 = vmatpush1.msra.mxu0 0.0
    %403 = vmatprep.mubr.f32.mxu0 0.0
    %404 = vmatmul.mubr.f32.gmra.mrb[0].mxu0 %v334
    %v405 = vpop.f32.mrb[0].mxu0
    %v406 = vadd.f32 %v326, %v405
    %v407 = vpop.f32.mrb[0].mxu0
    %v408 = vadd.f32 %v330, %v407
    %409 = vmatprep.mubr.f32.mxu0 0.0
    %410 = vmatmul.mubr.f32.gmra.mrb[0].mxu0 %v337
    %v411 = vpop.f32.mrb[0].mxu0
    %v412 = vadd.f32 %v326, %v411
    %v413 = vpop.f32.mrb[0].mxu0
    %v414 = vadd.f32 %v330, %v413
    %415 = vdwg.mxu0
    %v416 = vxor.u32 %v408, 2147483648
    %v417 = vxor.u32 %v414, 2147483648
    %v418 = vmul.f32 %v416, 1.442695
    %v419 = vpow.pop %v418
    %v420 = vmul.f32 %v417, 1.442695
    %v421 = vpow.pop %v420
    %v422 = vadd.f32 %v419, 1.0
    %v423 = vadd.f32 %v421, 1.0
    %v424 = vrcp.pop %v422
    %v425 = vmul.f32 1.0, %v424
    %v426 = vrcp.pop %v423
    %v427 = vmul.f32 1.0, %v426
    %v428 = vmul.f32 %v406, %v425
    %v429 = vmul.f32 %v412, %v427
    %s430 = scalar_lea.vmem %s2, 128
    %v431 = vld [vmem:[%s430] sm:$0xff]
    %v432 = vld [vmem:[%s430 + $0x8] sm:$0xff]
    %v433 = vld [vmem:[%s430 + $0x10] sm:$0xff]
    %v434 = vld [vmem:[%s430 + $0x18] sm:$0xff]
    %v435 = vld [vmem:[%s430 + $0x20] sm:$0xff]
    %v436 = vld [vmem:[%s430 + $0x28] sm:$0xff]
    %v437 = vld [vmem:[%s430 + $0x30] sm:$0xff]
    %v438 = vld [vmem:[%s430 + $0x38] sm:$0xff]
    %v439 = vld [vmem:[%s430 + $0x40] sm:$0xff]
    %v440 = vld [vmem:[%s430 + $0x48] sm:$0xff]
    %v441 = vld [vmem:[%s430 + $0x50] sm:$0xff]
    %v442 = vld [vmem:[%s430 + $0x58] sm:$0xff]
    %v443 = vld [vmem:[%s430 + $0x60] sm:$0xff]
    %v444 = vld [vmem:[%s430 + $0x68] sm:$0xff]
    %v445 = vld [vmem:[%s430 + $0x70] sm:$0xff]
    %v446 = vld [vmem:[%s430 + $0x78] sm:$0xff]
    %v447 = vld [vmem:[%s320 + $0x1] sm:$0x1]
    %v448 = vlaneseq
    %v449 = vshrl.u32 %v448, 7
    %v450 = vsub.s32 0, %v449
    %v451 = vrot.slane %v447, %v450
    %452 = vmatprep.subr.mxu0 0.0
    %453 = vmatpush1.msra.mxu0 %v431
    %454 = vmatprep.subr.mxu0 0.0
    %455 = vmatpush1.msra.mxu0 %v432
    %456 = vmatprep.subr.mxu0 0.0
    %457 = vmatpush1.msra.mxu0 %v433
    %458 = vmatprep.subr.mxu0 0.0
    %459 = vmatpush1.msra.mxu0 %v434
    %460 = vmatprep.subr.mxu0 0.0
    %461 = vmatpush1.msra.mxu0 %v435
    %462 = vmatprep.subr.mxu0 0.0
    %463 = vmatpush1.msra.mxu0 %v436
    %464 = vmatprep.subr.mxu0 0.0
    %465 = vmatpush1.msra.mxu0 %v437
    %466 = vmatprep.subr.mxu0 0.0
    %467 = vmatpush1.msra.mxu0 %v438
    %468 = vmatprep.subr.mxu0 0.0
    %469 = vmatpush1.msra.mxu0 %v439
    %470 = vmatprep.subr.mxu0 0.0
    %471 = vmatpush1.msra.mxu0 %v440
    %472 = vmatprep.subr.mxu0 0.0
    %473 = vmatpush1.msra.mxu0 %v441
    %474 = vmatprep.subr.mxu0 0.0
    %475 = vmatpush1.msra.mxu0 %v442
    %476 = vmatprep.subr.mxu0 0.0
    %477 = vmatpush1.msra.mxu0 %v443
    %478 = vmatprep.subr.mxu0 0.0
    %479 = vmatpush1.msra.mxu0 %v444
    %480 = vmatprep.subr.mxu0 0.0
    %481 = vmatpush1.msra.mxu0 %v445
    %482 = vmatprep.subr.mxu0 0.0
    %483 = vmatpush1.msra.mxu0 %v446
    %484 = vmatprep.subr.mxu0 0.0
    %485 = vmatpush1.msra.mxu0 0.0
    %486 = vmatprep.subr.mxu0 0.0
    %487 = vmatpush1.msra.mxu0 0.0
    %488 = vmatprep.subr.mxu0 0.0
    %489 = vmatpush1.msra.mxu0 0.0
    %490 = vmatprep.subr.mxu0 0.0
    %491 = vmatpush1.msra.mxu0 0.0
    %492 = vmatprep.subr.mxu0 0.0
    %493 = vmatpush1.msra.mxu0 0.0
    %494 = vmatprep.subr.mxu0 0.0
    %495 = vmatpush1.msra.mxu0 0.0
    %496 = vmatprep.subr.mxu0 0.0
    %497 = vmatpush1.msra.mxu0 0.0
    %498 = vmatprep.subr.mxu0 0.0
    %499 = vmatpush1.msra.mxu0 0.0
    %500 = vmatprep.subr.mxu0 0.0
    %501 = vmatpush1.msra.mxu0 0.0
    %502 = vmatprep.subr.mxu0 0.0
    %503 = vmatpush1.msra.mxu0 0.0
    %504 = vmatprep.subr.mxu0 0.0
    %505 = vmatpush1.msra.mxu0 0.0
    %506 = vmatprep.subr.mxu0 0.0
    %507 = vmatpush1.msra.mxu0 0.0
    %508 = vmatprep.subr.mxu0 0.0
    %509 = vmatpush1.msra.mxu0 0.0
    %510 = vmatprep.subr.mxu0 0.0
    %511 = vmatpush1.msra.mxu0 0.0
    %512 = vmatprep.subr.mxu0 0.0
    %513 = vmatpush1.msra.mxu0 0.0
    %514 = vmatprep.subr.mxu0 0.0
    %515 = vmatpush1.msra.mxu0 0.0
    %516 = vmatprep.mubr.f32.mxu0 0.0
    %517 = vmatmul.mubr.f32.gmra.mrb[0].mxu0 %v428
    %v518 = vpop.f32.mrb[0].mxu0
    %v519 = vadd.f32 %v451, %v518
    %v520 = vpop.f32.mrb[0].mxu0
    %521 = vmatprep.mubr.f32.mxu0 0.0
    %522 = vmatmul.mubr.f32.gmra.mrb[0].mxu0 %v429
    %v523 = vpop.f32.mrb[0].mxu0
    %v524 = vadd.f32 %v451, %v523
    %v525 = vpop.f32.mrb[0].mxu0
    %526 = vdwg.mxu0
    %v527 = vxor.u32 %v519, 2147483648
    %v528 = vxor.u32 %v524, 2147483648
    %v529 = vmul.f32 %v527, 1.442695
    %v530 = vpow.pop %v529
    %v531 = vmul.f32 %v528, 1.442695
    %v532 = vpow.pop %v531
    %v533 = vadd.f32 %v530, 1.0
    %v534 = vadd.f32 %v532, 1.0
    %v535 = vrcp.pop %v533
    %v536 = vmul.f32 1.0, %v535
    %v537 = vrcp.pop %v534
    %v538 = vmul.f32 1.0, %v537
    %541 = vrot.lane.b32.xlu0 %v536, 96
    %v542 = vpop.permute.xlu0 %541
    %543 = vrot.lane.b32.xlu0 %v538, 96
    %v544 = vpop.permute.xlu0 %543
    %v547 = vmul.f32 %v519, %v542
    %v548 = vmul.f32 %v524, %v544
    %v549 = vadd.f32 %v547, %v309
    %v550 = vadd.f32 %v548, %v310
    %v551 = vld [vmem:[%s320 + $0x2] sm:$0x1]
    %v552 = vld [vmem:[%s320 + $0x3] sm:$0x1]
    %v553 = vsel %vm46, %v549, 0.0
    %554 = vadd.xlane.f32.xlu0 %v553
    %v555 = vpop.xlane.xlu0 %554
    %v556 = vsel %vm46, %v550, 0.0
    %557 = vadd.xlane.f32.xlu0 %v556
    %v558 = vpop.xlane.xlu0 %557
    %v559 = vmul.f32 %v555, %v272
    %v560 = vmul.f32 %v558, %v272
    %v561 = vmul.f32 %v549, %v549
    %v562 = vmul.f32 %v550, %v550
    %v563 = vsel %vm46, %v561, 0.0
    %564 = vadd.xlane.f32.xlu0 %v563
    %v565 = vpop.xlane.xlu0 %564
    %v566 = vsel %vm46, %v562, 0.0
    %567 = vadd.xlane.f32.xlu0 %v566
    %v568 = vpop.xlane.xlu0 %567
    %v569 = vmul.f32 %v565, %v272
    %v570 = vmul.f32 %v568, %v272
    %v571 = vmul.f32 %v559, %v559
    %v572 = vmul.f32 %v560, %v560
    %v573 = vsub.f32 %v569, %v571
    %v574 = vsub.f32 %v570, %v572
    %v575 = vmax.f32 %v573, 0.0
    %v576 = vmax.f32 %v574, 0.0
    %v577 = vsub.f32 %v549, %v559
    %v578 = vsub.f32 %v550, %v560
    %v579 = vadd.f32 %v575, 1e-05
    %v580 = vadd.f32 %v576, 1e-05
    %v581 = vrsqrt.pop %v579
    %v582 = vrsqrt.pop %v580
    %v583 = vlaneseq
    %v584 = vshrl.u32 %v583, 7
    %v585 = vsub.s32 0, %v584
    %v586 = vrot.slane %v551, %v585
    %v587 = vmul.f32 %v581, %v586
    %v588 = vmul.f32 %v582, %v586
    %v589 = vmul.f32 %v577, %v587
    %v590 = vmul.f32 %v578, %v588
    %v591 = vlaneseq
    %v592 = vshrl.u32 %v591, 7
    %v593 = vsub.s32 0, %v592
    %v594 = vrot.slane %v552, %v593
    %v595 = vadd.f32 %v589, %v594
    %v596 = vadd.f32 %v590, %v594
    %v597 = vld [vmem:[%s4] sm:$0xff]
    %v598 = vld [vmem:[%s4 + $0x8] sm:$0xff]
    %v599 = vld [vmem:[%s4 + $0x10] sm:$0xff]
    %v600 = vld [vmem:[%s4 + $0x18] sm:$0xff]
    %v601 = vld [vmem:[%s5] sm:$0x1]
    %v603 = vlaneseq
    %v604 = vshrl.u32 %v603, 7
    %v605 = vsub.s32 0, %v604
    %v606 = vrot.slane %v601, %v605
    %v609 = vsel %vm46, %v595, 0
    %v612 = vsel %vm46, %v596, 0
    %614 = vmatprep.subr.mxu0 0.0
    %615 = vmatpush1.msra.mxu0 %v597
    %616 = vmatprep.subr.mxu0 0.0
    %617 = vmatpush1.msra.mxu0 %v598
    %618 = vmatprep.subr.mxu0 0.0
    %619 = vmatpush1.msra.mxu0 %v599
    %620 = vmatprep.subr.mxu0 0.0
    %621 = vmatpush1.msra.mxu0 %v600
    %622 = vmatprep.subr.mxu0 0.0
    %623 = vmatpush1.msra.mxu0 0.0
    %624 = vmatprep.subr.mxu0 0.0
    %625 = vmatpush1.msra.mxu0 0.0
    %626 = vmatprep.subr.mxu0 0.0
    %627 = vmatpush1.msra.mxu0 0.0
    %628 = vmatprep.subr.mxu0 0.0
    %629 = vmatpush1.msra.mxu0 0.0
    %630 = vmatprep.subr.mxu0 0.0
    %631 = vmatpush1.msra.mxu0 0.0
    %632 = vmatprep.subr.mxu0 0.0
    %633 = vmatpush1.msra.mxu0 0.0
    %634 = vmatprep.subr.mxu0 0.0
    %635 = vmatpush1.msra.mxu0 0.0
    %636 = vmatprep.subr.mxu0 0.0
    %637 = vmatpush1.msra.mxu0 0.0
    %638 = vmatprep.subr.mxu0 0.0
    %639 = vmatpush1.msra.mxu0 0.0
    %640 = vmatprep.subr.mxu0 0.0
    %641 = vmatpush1.msra.mxu0 0.0
    %642 = vmatprep.subr.mxu0 0.0
    %643 = vmatpush1.msra.mxu0 0.0
    %644 = vmatprep.subr.mxu0 0.0
    %645 = vmatpush1.msra.mxu0 0.0
    %646 = vmatprep.subr.mxu0 0.0
    %647 = vmatpush1.msra.mxu0 0.0
    %648 = vmatprep.subr.mxu0 0.0
    %649 = vmatpush1.msra.mxu0 0.0
    %650 = vmatprep.subr.mxu0 0.0
    %651 = vmatpush1.msra.mxu0 0.0
    %652 = vmatprep.subr.mxu0 0.0
    %653 = vmatpush1.msra.mxu0 0.0
    %654 = vmatprep.subr.mxu0 0.0
    %655 = vmatpush1.msra.mxu0 0.0
    %656 = vmatprep.subr.mxu0 0.0
    %657 = vmatpush1.msra.mxu0 0.0
    %658 = vmatprep.subr.mxu0 0.0
    %659 = vmatpush1.msra.mxu0 0.0
    %660 = vmatprep.subr.mxu0 0.0
    %661 = vmatpush1.msra.mxu0 0.0
    %662 = vmatprep.subr.mxu0 0.0
    %663 = vmatpush1.msra.mxu0 0.0
    %664 = vmatprep.subr.mxu0 0.0
    %665 = vmatpush1.msra.mxu0 0.0
    %666 = vmatprep.subr.mxu0 0.0
    %667 = vmatpush1.msra.mxu0 0.0
    %668 = vmatprep.subr.mxu0 0.0
    %669 = vmatpush1.msra.mxu0 0.0
    %670 = vmatprep.subr.mxu0 0.0
    %671 = vmatpush1.msra.mxu0 0.0
    %672 = vmatprep.subr.mxu0 0.0
    %673 = vmatpush1.msra.mxu0 0.0
    %674 = vmatprep.subr.mxu0 0.0
    %675 = vmatpush1.msra.mxu0 0.0
    %676 = vmatprep.subr.mxu0 0.0
    %677 = vmatpush1.msra.mxu0 0.0
    %678 = vmatprep.mubr.f32.mxu0 0.0
    %679 = vmatmul.mubr.f32.gmra.mrb[0].mxu0 %v609
    %v680 = vpop.f32.mrb[0].mxu0
    %v681 = vadd.f32 %v606, %v680
    %v682 = vpop.f32.mrb[0].mxu0
    %683 = vmatprep.mubr.f32.mxu0 0.0
    %684 = vmatmul.mubr.f32.gmra.mrb[0].mxu0 %v612
    %v685 = vpop.f32.mrb[0].mxu0
    %v686 = vadd.f32 %v606, %v685
    %v687 = vpop.f32.mrb[0].mxu0
    %688 = vdwg.mxu0
    %vm689 = vcmask 523264
    %690 = vst.msk [vmem:[#allocation2] sm:$0xff] %vm689, %v681
    %691 = vst.msk [vmem:[#allocation2 + $0x8] sm:$0xff] %vm689, %v686
    // Predicated region
    $region26: #{tpu_custom_call.1} parent=1 // pred_check
      _
    $region27: #{tpu_custom_call.1} parent=1 // pred_check_branch
      %693 = sbr.rel (0) target = $region29
    $region28: #{tpu_custom_call.1} parent=1 // pred_region
      %s695 = ssub.s32 256, 256
      %696 = vsyncadd [#allocation3], %s695
      %s697 = sshll.u32 [#allocation2], 4
      %s698 = int_to_ptr.vmem [resolvable:$true] %s697
      %703 = dma.vmem_to_hbm [thread:$0]  %s698, 256, %s6, [#allocation3], 128, 128, 8
    $region29: #{tpu_custom_call.1} parent=1 // pred_fallthru
      _
    // Predicated region
    $region30: #{tpu_custom_call.1} parent=1 // pred_check
      _
    $region31: #{tpu_custom_call.1} parent=1 // pred_check_branch
      %705 = sbr.rel (0) target = $region33
    $region32: #{tpu_custom_call.1} parent=1 // pred_region
      %706 = dma.done [#allocation3], 256
    $region33: #{tpu_custom_call.1} parent=1 // pred_fallthru
      _
    %707 = vsyncpa [#allocation3], 1

</llo_original>
